<compile_context>
chip_gen: v7x
topology: tpu7x:2x2x1
jax: 0.10.0
libtpu: 0.0.40
codegen_flags: <defaults>
</compile_context>

<pallas_src>
import jax
import jax.numpy as jnp
from jax.experimental import pallas as pl
from jax.experimental.pallas import tpu as pltpu

_OFFSET = 128.0 / 255.0
# Target elements per plane block: 128K elems (= 512 KiB f32 per plane block,
# ~3 MiB total per grid step, ~6 MiB double-buffered).
_TARGET_BLOCK_ELEMS = 128 * 1024


def _ycbcr2rgb_kernel(y_ref, cb_ref, cr_ref, o_ref):
    # Views: inputs (1, 1, TR, LANE); output (1, 3, TR, LANE).
    y = y_ref[0, 0].astype(jnp.float32)
    cb = cb_ref[0, 0].astype(jnp.float32) - _OFFSET
    cr = cr_ref[0, 0].astype(jnp.float32) - _OFFSET

    r = y + 1.402 * cr
    g = y - 0.344136 * cb - 0.714136 * cr
    b = y + 1.772 * cb

    o_ref[0, 0] = r.astype(o_ref.dtype)
    o_ref[0, 1] = g.astype(o_ref.dtype)
    o_ref[0, 2] = b.astype(o_ref.dtype)


def _choose_tiling(flat_len):
    """Pick (lane, rows_pad, tile_rows, n_row_tiles, padded_len) for a plane of
    flat_len = H*W elements."""
    lane = 128
    for cand in (2048, 1024, 512, 256, 128):
        if flat_len % cand == 0:
            lane = cand
            break
    rows = pl.cdiv(flat_len, lane)
    # Rows per tile: multiple of 8 (or the full rows dim if smaller).
    target_rows = max(8, _TARGET_BLOCK_ELEMS // lane)
    tile_rows = min(rows, target_rows)
    n_row_tiles = pl.cdiv(rows, tile_rows)
    rows_pad = n_row_tiles * tile_rows
    return lane, rows_pad, tile_rows, n_row_tiles, rows_pad * lane


def ycbcr2rgb(y, cb, cr):
    """y, cb, cr: (N, 1, H, W) float arrays -> (N, 3, H, W) with [R, G, B]."""
    assert y.shape == cb.shape == cr.shape
    n, c, h, w = y.shape
    assert c == 1
    dtype = y.dtype
    flat_len = h * w

    lane, rows_pad, tile_rows, n_row_tiles, padded_len = _choose_tiling(flat_len)

    def prep(x):
        xf = x.reshape(n, flat_len)
        if padded_len != flat_len:
            xf = jnp.pad(xf, ((0, 0), (0, padded_len - flat_len)))
        return xf.reshape(n, 1, rows_pad, lane)

    yp, cbp, crp = prep(y), prep(cb), prep(cr)

    in_spec = pl.BlockSpec((1, 1, tile_rows, lane), lambda i, j: (i, 0, j, 0))
    out_spec = pl.BlockSpec((1, 3, tile_rows, lane), lambda i, j: (i, 0, j, 0))

    out = pl.pallas_call(
        _ycbcr2rgb_kernel,
        out_shape=jax.ShapeDtypeStruct((n, 3, rows_pad, lane), dtype),
        grid_spec=pltpu.PrefetchScalarGridSpec(
            num_scalar_prefetch=0,
            grid=(n, n_row_tiles),
            in_specs=[in_spec, in_spec, in_spec],
            out_specs=out_spec,
        ),
        compiler_params=pltpu.CompilerParams(
            dimension_semantics=("parallel", "parallel"),
        ),
    )(yp, cbp, crp)

    out = out.reshape(n, 3, padded_len)
    if padded_len != flat_len:
        out = out[:, :, :flat_len]
    return out.reshape(n, 3, h, w)


def _reference(y, cb, cr):
    y = y.astype(jnp.float32)
    cb = cb.astype(jnp.float32)
    cr = cr.astype(jnp.float32)
    r = y + 1.402 * (cr - _OFFSET)
    g = y - 0.344136 * (cb - _OFFSET) - 0.714136 * (cr - _OFFSET)
    b = y + 1.772 * (cb - _OFFSET)
    return jnp.concatenate([r, g, b], axis=1)


if __name__ == "__main__":
    key = jax.random.PRNGKey(0)

    # Test 1: f32, nicely divisible spatial size.
    k1, k2, k3, k4 = jax.random.split(key, 4)
    shape = (2, 1, 16, 16)
    y = jax.random.uniform(k1, shape, dtype=jnp.float32)
    cb = jax.random.uniform(k2, shape, dtype=jnp.float32)
    cr = jax.random.uniform(k3, shape, dtype=jnp.float32)
    out = jax.block_until_ready(ycbcr2rgb(y, cb, cr))
    assert out.shape == (2, 3, 16, 16), out.shape
    assert jnp.allclose(out, _reference(y, cb, cr), atol=1e-5, rtol=1e-5)

    # Test 2: odd spatial size (exercises lane padding / slice path).
    shape2 = (1, 1, 17, 13)
    ka, kb, kc = jax.random.split(k4, 3)
    y2 = jax.random.uniform(ka, shape2, dtype=jnp.float32)
    cb2 = jax.random.uniform(kb, shape2, dtype=jnp.float32)
    cr2 = jax.random.uniform(kc, shape2, dtype=jnp.float32)
    out2 = jax.block_until_ready(ycbcr2rgb(y2, cb2, cr2))
    assert out2.shape == (1, 3, 17, 13), out2.shape
    assert jnp.allclose(out2, _reference(y2, cb2, cr2), atol=1e-5, rtol=1e-5)

    # Test 3: bf16 inputs (exercises the output-dtype cast path).
    y3 = y.astype(jnp.bfloat16)
    cb3 = cb.astype(jnp.bfloat16)
    cr3 = cr.astype(jnp.bfloat16)
    out3 = jax.block_until_ready(ycbcr2rgb(y3, cb3, cr3))
    assert out3.dtype == jnp.bfloat16
    assert jnp.allclose(out3.astype(jnp.float32), _reference(y3, cb3, cr3),
                        atol=2e-2, rtol=2e-2)

    print("KERNEL_OK")
</pallas_src>

<mosaic_0001>
module attributes {stable_mosaic.version = 11 : i64} {
  func.func @_ycbcr2rgb_kernel(%arg0: i32, %arg1: i32, %arg2: memref<1x1x1x256xf32, #tpu.memory_space<vmem>>, %arg3: memref<1x1x1x256xf32, #tpu.memory_space<vmem>>, %arg4: memref<1x1x1x256xf32, #tpu.memory_space<vmem>>, %arg5: memref<1x3x1x256xf32, #tpu.memory_space<vmem>>) attributes {dimension_semantics = [#tpu.dimension_semantics<parallel>, #tpu.dimension_semantics<parallel>], iteration_bounds = array<i64: 2, 1>, scalar_prefetch = 0 : i64, scratch_operands = 0 : i64, tpu.core_type = #tpu.core_type<tc>, window_params = [{transform_indices = @transform_0, window_bounds = array<i64: 1, 1, 1, 256>}, {transform_indices = @transform_1, window_bounds = array<i64: 1, 1, 1, 256>}, {transform_indices = @transform_2, window_bounds = array<i64: 1, 1, 1, 256>}, {transform_indices = @transform_3, window_bounds = array<i64: 1, 3, 1, 256>}]} {
    %c0 = arith.constant 0 : index
    %c0_0 = arith.constant 0 : index
    %c0_1 = arith.constant 0 : index
    %c0_2 = arith.constant 0 : index
    %0 = vector.load %arg2[%c0, %c0_0, %c0_1, %c0_2] : memref<1x1x1x256xf32, #tpu.memory_space<vmem>>, vector<1x1x1x256xf32>
    %1 = vector.shape_cast %0 : vector<1x1x1x256xf32> to vector<1x256xf32>
    %c0_3 = arith.constant 0 : index
    %c0_4 = arith.constant 0 : index
    %c0_5 = arith.constant 0 : index
    %c0_6 = arith.constant 0 : index
    %2 = vector.load %arg3[%c0_3, %c0_4, %c0_5, %c0_6] : memref<1x1x1x256xf32, #tpu.memory_space<vmem>>, vector<1x1x1x256xf32>
    %3 = vector.shape_cast %2 : vector<1x1x1x256xf32> to vector<1x256xf32>
    %cst = arith.constant 0.501960814 : f32
    %4 = vector.broadcast %cst : f32 to vector<1x256xf32>
    %5 = arith.subf %3, %4 : vector<1x256xf32>
    %c0_7 = arith.constant 0 : index
    %c0_8 = arith.constant 0 : index
    %c0_9 = arith.constant 0 : index
    %c0_10 = arith.constant 0 : index
    %6 = vector.load %arg4[%c0_7, %c0_8, %c0_9, %c0_10] : memref<1x1x1x256xf32, #tpu.memory_space<vmem>>, vector<1x1x1x256xf32>
    %7 = vector.shape_cast %6 : vector<1x1x1x256xf32> to vector<1x256xf32>
    %cst_11 = arith.constant 0.501960814 : f32
    %8 = vector.broadcast %cst_11 : f32 to vector<1x256xf32>
    %9 = arith.subf %7, %8 : vector<1x256xf32>
    %cst_12 = arith.constant 1.402000e+00 : f32
    %10 = vector.broadcast %cst_12 : f32 to vector<1x256xf32>
    %11 = arith.mulf %10, %9 : vector<1x256xf32>
    %12 = arith.addf %1, %11 : vector<1x256xf32>
    %cst_13 = arith.constant 3.441360e-01 : f32
    %13 = vector.broadcast %cst_13 : f32 to vector<1x256xf32>
    %14 = arith.mulf %13, %5 : vector<1x256xf32>
    %15 = arith.subf %1, %14 : vector<1x256xf32>
    %cst_14 = arith.constant 7.141360e-01 : f32
    %16 = vector.broadcast %cst_14 : f32 to vector<1x256xf32>
    %17 = arith.mulf %16, %9 : vector<1x256xf32>
    %18 = arith.subf %15, %17 : vector<1x256xf32>
    %cst_15 = arith.constant 1.772000e+00 : f32
    %19 = vector.broadcast %cst_15 : f32 to vector<1x256xf32>
    %20 = arith.mulf %19, %5 : vector<1x256xf32>
    %21 = arith.addf %1, %20 : vector<1x256xf32>
    %c0_16 = arith.constant 0 : index
    %c0_17 = arith.constant 0 : index
    %c0_18 = arith.constant 0 : index
    %c0_19 = arith.constant 0 : index
    %22 = vector.load %arg5[%c0_16, %c0_17, %c0_18, %c0_19] : memref<1x3x1x256xf32, #tpu.memory_space<vmem>>, vector<1x1x1x256xf32>
    %23 = vector.shape_cast %22 : vector<1x1x1x256xf32> to vector<1x256xf32>
    %24 = vector.shape_cast %12 : vector<1x256xf32> to vector<1x1x1x256xf32>
    tpu.vector_store %arg5[%c0_16, %c0_17, %c0_18, %c0_19], %24 {strides = array<i32>} : memref<1x3x1x256xf32, #tpu.memory_space<vmem>>, vector<1x1x1x256xf32>,
    %c0_20 = arith.constant 0 : index
    %c1 = arith.constant 1 : index
    %c0_21 = arith.constant 0 : index
    %c0_22 = arith.constant 0 : index
    %25 = vector.load %arg5[%c0_20, %c1, %c0_21, %c0_22] : memref<1x3x1x256xf32, #tpu.memory_space<vmem>>, vector<1x1x1x256xf32>
    %26 = vector.shape_cast %25 : vector<1x1x1x256xf32> to vector<1x256xf32>
    %27 = vector.shape_cast %18 : vector<1x256xf32> to vector<1x1x1x256xf32>
    tpu.vector_store %arg5[%c0_20, %c1, %c0_21, %c0_22], %27 {strides = array<i32>} : memref<1x3x1x256xf32, #tpu.memory_space<vmem>>, vector<1x1x1x256xf32>,
    %c0_23 = arith.constant 0 : index
    %c2 = arith.constant 2 : index
    %c0_24 = arith.constant 0 : index
    %c0_25 = arith.constant 0 : index
    %28 = vector.load %arg5[%c0_23, %c2, %c0_24, %c0_25] : memref<1x3x1x256xf32, #tpu.memory_space<vmem>>, vector<1x1x1x256xf32>
    %29 = vector.shape_cast %28 : vector<1x1x1x256xf32> to vector<1x256xf32>
    %30 = vector.shape_cast %21 : vector<1x256xf32> to vector<1x1x1x256xf32>
    tpu.vector_store %arg5[%c0_23, %c2, %c0_24, %c0_25], %30 {strides = array<i32>} : memref<1x3x1x256xf32, #tpu.memory_space<vmem>>, vector<1x1x1x256xf32>,
    return
  }
  func.func @transform_0(%arg0: i32, %arg1: i32) -> (i32, i32, i32, i32) {
    %c0_i32 = arith.constant 0 : i32
    %c0_i32_0 = arith.constant 0 : i32
    %c0_i32_1 = arith.constant 0 : i32
    return %arg0, %c0_i32, %arg1, %c0_i32_0 : i32, i32, i32, i32
  }
  func.func @transform_1(%arg0: i32, %arg1: i32) -> (i32, i32, i32, i32) {
    %c0_i32 = arith.constant 0 : i32
    %c0_i32_0 = arith.constant 0 : i32
    %c0_i32_1 = arith.constant 0 : i32
    return %arg0, %c0_i32, %arg1, %c0_i32_0 : i32, i32, i32, i32
  }
  func.func @transform_2(%arg0: i32, %arg1: i32) -> (i32, i32, i32, i32) {
    %c0_i32 = arith.constant 0 : i32
    %c0_i32_0 = arith.constant 0 : i32
    %c0_i32_1 = arith.constant 0 : i32
    return %arg0, %c0_i32, %arg1, %c0_i32_0 : i32, i32, i32, i32
  }
  func.func @transform_3(%arg0: i32, %arg1: i32) -> (i32, i32, i32, i32) {
    %c0_i32 = arith.constant 0 : i32
    %c0_i32_0 = arith.constant 0 : i32
    %c0_i32_1 = arith.constant 0 : i32
    return %arg0, %c0_i32, %arg1, %c0_i32_0 : i32, i32, i32, i32
  }
}

</mosaic_0001>

<llo_original>
// kernel: tpu_custom_call.1
$region0: #{tpu_custom_call.1}
  #allocation0 [shape = 'u32[]', space=smem, size = 0x4, offset = 0x4, fixed_abs, tag = 'smem constant byte address 0x4 - core index']
  #allocation1 [shape = 'u32[144,128]{1,0:T(1,128)}', space=vmem, size = 0x12000, scoped, tag = 'internal scratch']
  %s0 = inlined_call_operand.hbm [shape: f32[2,1,1,256], index: 0, kind: input, shape index: {}]
  %s1 = inlined_call_operand.hbm [shape: f32[2,1,1,256], index: 1, kind: input, shape index: {}]
  %s2 = inlined_call_operand.vmem [shape: f32[2,1,1,256], index: 2, kind: input, shape index: {}]
  %s3 = inlined_call_operand.hbm [shape: f32[2,3,1,256], index: 3, kind: output, shape index: {}]
  %s4 = sld [smem:[#allocation0]]
  $region53: #{tpu_custom_call.1} parent=0
    _
  %s6 = ssub.s32 1, %s4
  %s7 = scalar_select 0, %s6, %s4
  $region1: #{tpu_custom_call.1} parent=0
    #allocation2 [shape = 'u8[2048]{0}', space=vmem, size = 0x800, scoped, tag = 'input window, operand 0']
    #allocation3 [shape = 's32[2]{0}', space=sflag, size = 0x8, scoped, tag = 'scoped memory for tpu_custom_call.1']
    #allocation4 [shape = 's32[2]{0}', space=sflag, size = 0x8, scoped, tag = 'scoped memory for tpu_custom_call.1']
    #allocation5 [shape = 'u8[2048]{0}', space=vmem, size = 0x800, scoped, tag = 'input window, operand 1']
    #allocation6 [shape = 's32[2]{0}', space=sflag, size = 0x8, scoped, tag = 'scoped memory for tpu_custom_call.1']
    #allocation7 [shape = 'u8[6144]{0}', space=vmem, size = 0x1800, scoped, tag = 'output window, operand 0']
    %8 = vsyncpa [#allocation3], 0
    %s9 = scalar_lea.sflag [#allocation3], 1
    %10 = vsyncpa %s9, 0
    %11 = vsyncpa [#allocation6], 0
    %s12 = scalar_lea.sflag [#allocation6], 1
    %13 = vsyncpa %s12, 0
    %14 = vsyncpa [#allocation4], 0
    %s15 = scalar_lea.sflag [#allocation4], 1
    %16 = vsyncpa %s15, 0
    loop: start=0, step=1, limit=4
    $region2: #{tpu_custom_call.1} parent=1 // loop_pre_header
      _
    $region3: #{tpu_custom_call.1} parent=1 // loop_header
      %s18 = sphi 0, %s22
      %p19 = scmp.ge.s32.totalorder %s18, 4
      %s25 = sphi 0, %s37
      %s26 = sphi 0, %s33
      %s27 = sphi 0, %s25
      %s28 = sphi 0, %s26
      %s29 = sphi 0, %s27
      %s30 = sphi 0, %s28
      %s42 = sphi 0, %s44
      %s45 = sphi 0, %s42
      %s46 = sphi 0, %s45
      %s62 = sphi 0, %s46
      %s70 = sphi 0, %s72
      %s73 = sphi 0, %s70
      %s74 = sphi 0, %s73
      %s90 = sphi 0, %s74
      %s98 = sphi 0, %s100
      %s101 = sphi 0, %s98
      %s102 = sphi 0, %s101
      %s118 = sphi 0, %s102
      %s126 = sphi 0, %s128
      %s129 = sphi 0, %s126
      %s130 = sphi 0, %s129
      %s146 = sphi 0, %s130
    $region4: #{tpu_custom_call.1} parent=1 // loop_header_branch
      %21 = sbr.rel (%p19) target = $region8
    $region5: #{tpu_custom_call.1} parent=1 // loop_body
      %s23 = ssub.s32 %s18, 1
      %s24 = ssub.s32 %s18, 2
      %s31 = sadd.s32 1, %s26
      %p32 = scmp.ge.s32.totalorder %s31, 1
      %s33 = scalar_select %p32, 0, %s31
      %s34 = sadd.s32 1, %s25
      %s35 = scalar_select %p32, %s34, %s25
      %p36 = scmp.ge.s32.totalorder %s35, 2
      %s37 = scalar_select %p36, 0, %s35
      %s38 = ssub.s32 %s25, %s37
      %s39 = ssub.s32 %s26, %s33
      %s40 = sor.u32 %s38, %s39
      %p41 = scmp.eq.s32.totalorder %s40, 0
      %s43 = sadd.s32 %s42, 1
      %s44 = scalar_select %p41, %s42, %s43
      %p47 = pneg %p41
      %p48 = scmp.eq.s32.totalorder %s18, 1
      %p49 = por %p47, %p48
      %p50 = scmp.ne.s32.totalorder %s42, %s45
      %p51 = scmp.eq.s32.totalorder %s18, 0
      %p52 = por %p50, %p51
      %p53 = scmp.ne.s32.totalorder %s42, %s45
      %p54 = scmp.eq.s32.totalorder %s23, 1
      %p55 = por %p53, %p54
      %p56 = scmp.ne.s32.totalorder %s45, %s46
      %p57 = scmp.eq.s32.totalorder %s23, 0
      %p58 = por %p56, %p57
      %p59 = scmp.ne.s32.totalorder %s45, %s46
      %p60 = scmp.eq.s32.totalorder %s24, 1
      %p61 = por %p59, %p60
      %p63 = scmp.ne.s32.totalorder %s46, %s62
      %p64 = scmp.eq.s32.totalorder %s24, 0
      %p65 = por %p63, %p64
      %s66 = ssub.s32 %s25, %s37
      %s67 = ssub.s32 %s26, %s33
      %s68 = sor.u32 %s66, %s67
      %p69 = scmp.eq.s32.totalorder %s68, 0
      %s71 = sadd.s32 %s70, 1
      %s72 = scalar_select %p69, %s70, %s71
      %p75 = pneg %p69
      %p76 = scmp.eq.s32.totalorder %s18, 1
      %p77 = por %p75, %p76
      %p78 = scmp.ne.s32.totalorder %s70, %s73
      %p79 = scmp.eq.s32.totalorder %s18, 0
      %p80 = por %p78, %p79
      %p81 = scmp.ne.s32.totalorder %s70, %s73
      %p82 = scmp.eq.s32.totalorder %s23, 1
      %p83 = por %p81, %p82
      %p84 = scmp.ne.s32.totalorder %s73, %s74
      %p85 = scmp.eq.s32.totalorder %s23, 0
      %p86 = por %p84, %p85
      %p87 = scmp.ne.s32.totalorder %s73, %s74
      %p88 = scmp.eq.s32.totalorder %s24, 1
      %p89 = por %p87, %p88
      %p91 = scmp.ne.s32.totalorder %s74, %s90
      %p92 = scmp.eq.s32.totalorder %s24, 0
      %p93 = por %p91, %p92
      %s94 = ssub.s32 %s25, %s37
      %s95 = ssub.s32 %s26, %s33
      %s96 = sor.u32 %s94, %s95
      %p97 = scmp.eq.s32.totalorder %s96, 0
      %s99 = sadd.s32 %s98, 1
      %s100 = scalar_select %p97, %s98, %s99
      %p103 = pneg %p97
      %p104 = scmp.eq.s32.totalorder %s18, 1
      %p105 = por %p103, %p104
      %p106 = scmp.ne.s32.totalorder %s98, %s101
      %p107 = scmp.eq.s32.totalorder %s18, 0
      %p108 = por %p106, %p107
      %p109 = scmp.ne.s32.totalorder %s98, %s101
      %p110 = scmp.eq.s32.totalorder %s23, 1
      %p111 = por %p109, %p110
      %p112 = scmp.ne.s32.totalorder %s101, %s102
      %p113 = scmp.eq.s32.totalorder %s23, 0
      %p114 = por %p112, %p113
      %p115 = scmp.ne.s32.totalorder %s101, %s102
      %p116 = scmp.eq.s32.totalorder %s24, 1
      %p117 = por %p115, %p116
      %p119 = scmp.ne.s32.totalorder %s102, %s118
      %p120 = scmp.eq.s32.totalorder %s24, 0
      %p121 = por %p119, %p120
      %s122 = ssub.s32 %s25, %s37
      %s123 = ssub.s32 %s26, %s33
      %s124 = sor.u32 %s122, %s123
      %p125 = scmp.eq.s32.totalorder %s124, 0
      %s127 = sadd.s32 %s126, 1
      %s128 = scalar_select %p125, %s126, %s127
      %p131 = pneg %p125
      %p132 = scmp.eq.s32.totalorder %s18, 1
      %p133 = por %p131, %p132
      %p134 = scmp.ne.s32.totalorder %s126, %s129
      %p135 = scmp.eq.s32.totalorder %s18, 0
      %p136 = por %p134, %p135
      %p137 = scmp.ne.s32.totalorder %s126, %s129
      %p138 = scmp.eq.s32.totalorder %s23, 1
      %p139 = por %p137, %p138
      %p140 = scmp.ne.s32.totalorder %s129, %s130
      %p141 = scmp.eq.s32.totalorder %s23, 0
      %p142 = por %p140, %p141
      %p143 = scmp.ne.s32.totalorder %s129, %s130
      %p144 = scmp.eq.s32.totalorder %s24, 1
      %p145 = por %p143, %p144
      %p147 = scmp.ne.s32.totalorder %s130, %s146
      %p148 = scmp.eq.s32.totalorder %s24, 0
      %p149 = por %p147, %p148
      %p150 = scmp.le.s32.totalorder 1, %s18
      %p151 = scmp.lt.s32.totalorder %s18, 3
      %p152 = pnand %p150, %p151
      %p153 = pneg %p152
      // Predicated region
      $region9: #{tpu_custom_call.1} parent=5 // pred_check
        _
      $region10: #{tpu_custom_call.1} parent=5 // pred_check_branch
        %155 = sbr.rel (%p152) target = $region12
      $region11: #{tpu_custom_call.1} parent=5 // pred_region
        %s156 = ssub.s32 %s18, 1
      $region12: #{tpu_custom_call.1} parent=5 // pred_fallthru
        _
      %p157 = scmp.lt.s32.totalorder %s18, 2
      // Predicated region
      $region13: #{tpu_custom_call.1} parent=5 // pred_check
        %p158 = pneg %p157
      $region14: #{tpu_custom_call.1} parent=5 // pred_check_branch
        %160 = sbr.rel (%p158) target = $region16
      $region15: #{tpu_custom_call.1} parent=5 // pred_region
        // Predicated region
        $region17: #{tpu_custom_call.1} parent=15 // pred_check
          %p161 = pneg %p52
        $region18: #{tpu_custom_call.1} parent=15 // pred_check_branch
          %163 = sbr.rel (%p161) target = $region20
        $region19: #{tpu_custom_call.1} parent=15 // pred_region
          %s164 = sand.u32 %s42, 1
          %s165 = scalar_lea.sflag [#allocation3], %s164
          %s166 = sand.u32 %s42, 1
          %s167 = smul.addr %s166, 2
          %s168 = scalar_lea.vmem [#allocation2], %s167
          %s170 = ssub.s32 32, 32
          %171 = vsyncadd %s165, %s170
          %s172 = smul.addr %s26, 2
          %s173 = smul.addr %s25, 2
          %s174 = sadd.s32 %s172, %s173
          %s175 = smul.addr %s174, 16
          %s176 = scalar_lea.hbm %s0, %s175
          %s178 = sshll.u32 %s168, 4
          %s179 = int_to_ptr.vmem [resolvable:$true] %s178
          %181 = dma.hbm_to_vmem [thread:$0]  %s176, 32, %s179, %s165
        $region20: #{tpu_custom_call.1} parent=15 // pred_fallthru
          _
        // Predicated region
        $region21: #{tpu_custom_call.1} parent=15 // pred_check
          %p182 = pneg %p80
        $region22: #{tpu_custom_call.1} parent=15 // pred_check_branch
          %184 = sbr.rel (%p182) target = $region24
        $region23: #{tpu_custom_call.1} parent=15 // pred_region
          %s185 = sand.u32 %s70, 1
          %s186 = scalar_lea.sflag [#allocation6], %s185
          %s187 = sand.u32 %s70, 1
          %s188 = smul.addr %s187, 2
          %s189 = scalar_lea.vmem [#allocation5], %s188
          %s191 = ssub.s32 32, 32
          %192 = vsyncadd %s186, %s191
          %s193 = smul.addr %s26, 2
          %s194 = smul.addr %s25, 2
          %s195 = sadd.s32 %s193, %s194
          %s196 = smul.addr %s195, 16
          %s197 = scalar_lea.hbm %s1, %s196
          %s199 = sshll.u32 %s189, 4
          %s200 = int_to_ptr.vmem [resolvable:$true] %s199
          %202 = dma.hbm_to_vmem [thread:$0]  %s197, 32, %s200, %s186
        $region24: #{tpu_custom_call.1} parent=15 // pred_fallthru
          _
        // Predicated region
        $region25: #{tpu_custom_call.1} parent=15 // pred_check
          %p203 = pneg %p108
        $region26: #{tpu_custom_call.1} parent=15 // pred_check_branch
          %205 = sbr.rel (%p203) target = $region28
        $region27: #{tpu_custom_call.1} parent=15 // pred_region
          %p206 = scmp.lt.s32.totalorder %s25, 1
          %s207 = scalar_select %p206, %s25, 1
          %p208 = scmp.lt.s32.totalorder %s26, 0
          %s209 = scalar_select %p208, %s26, 0
          %s210 = smul.addr %s209, 2
          %s211 = smul.addr %s207, 2
          %s212 = sadd.s32 %s210, %s211
          %s213 = scalar_lea.vmem %s2, %s212
        $region28: #{tpu_custom_call.1} parent=15 // pred_fallthru
          _
      $region16: #{tpu_custom_call.1} parent=5 // pred_fallthru
        _
      %p214 = scmp.le.s32.totalorder 1, %s18
      %p215 = scmp.lt.s32.totalorder %s18, 3
      %p216 = pnand %p214, %p215
      %p217 = pneg %p216
      // Predicated region
      $region29: #{tpu_custom_call.1} parent=5 // pred_check
        _
      $region30: #{tpu_custom_call.1} parent=5 // pred_check_branch
        %219 = sbr.rel (%p216) target = $region32
      $region31: #{tpu_custom_call.1} parent=5 // pred_region
        %s220 = ssub.s32 %s18, 1
        %s221 = sand.u32 %s45, 1
        %s222 = scalar_lea.sflag [#allocation3], %s221
        %s223 = sand.u32 %s45, 1
        %s224 = smul.addr %s223, 2
        %s225 = scalar_lea.vmem [#allocation2], %s224
        // Predicated region
        $region33: #{tpu_custom_call.1} parent=31 // pred_check
          %p226 = pneg %p58
        $region34: #{tpu_custom_call.1} parent=31 // pred_check_branch
          %228 = sbr.rel (%p226) target = $region36
        $region35: #{tpu_custom_call.1} parent=31 // pred_region
          %229 = dma.done %s222, 32
        $region36: #{tpu_custom_call.1} parent=31 // pred_fallthru
          _
        %s230 = sand.u32 %s73, 1
        %s231 = scalar_lea.sflag [#allocation6], %s230
        %s232 = sand.u32 %s73, 1
        %s233 = smul.addr %s232, 2
        %s234 = scalar_lea.vmem [#allocation5], %s233
        // Predicated region
        $region37: #{tpu_custom_call.1} parent=31 // pred_check
          %p235 = pneg %p86
        $region38: #{tpu_custom_call.1} parent=31 // pred_check_branch
          %237 = sbr.rel (%p235) target = $region40
        $region39: #{tpu_custom_call.1} parent=31 // pred_region
          %238 = dma.done %s231, 32
        $region40: #{tpu_custom_call.1} parent=31 // pred_fallthru
          _
        %s239 = sand.u32 %s45, 1
        %s240 = scalar_lea.sflag [#allocation3], %s239
        %s241 = sand.u32 %s45, 1
        %s242 = smul.addr %s241, 2
        %s243 = scalar_lea.vmem [#allocation2], %s242
        %p244 = pneg %p58
        %p245 = pneg %p55
        %s246 = sand.u32 %s73, 1
        %s247 = scalar_lea.sflag [#allocation6], %s246
        %s248 = sand.u32 %s73, 1
        %s249 = smul.addr %s248, 2
        %s250 = scalar_lea.vmem [#allocation5], %s249
        %p251 = pneg %p86
        %p252 = pneg %p83
        %p253 = scmp.lt.s32.totalorder %s27, 1
        %s254 = scalar_select %p253, %s27, 1
        %p255 = scmp.lt.s32.totalorder %s28, 0
        %s256 = scalar_select %p255, %s28, 0
        %s257 = smul.addr %s256, 2
        %s258 = smul.addr %s254, 2
        %s259 = sadd.s32 %s257, %s258
        %s260 = scalar_lea.vmem %s2, %s259
        %p261 = pneg %p114
        %p262 = pneg %p111
        %p263 = pneg %p142
        %p264 = pneg %p139
        %s265 = sand.u32 %s129, 1
        %s266 = scalar_lea.sflag [#allocation4], %s265
        %s267 = sand.u32 %s129, 1
        %s268 = smul.addr %s267, 6
        %s269 = scalar_lea.vmem [#allocation7], %s268
        %p270 = scmp.lt.s32.totalorder %s27, 1
        %s271 = scalar_select %p270, %s27, 1
        %p272 = scmp.lt.s32.totalorder %s28, 0
        %s273 = scalar_select %p272, %s28, 0
        %s274 = smul.addr %s273, 2
        %s275 = smul.addr %s271, 2
        %s276 = sadd.s32 %s274, %s275
        %s277 = scalar_lea.vmem %s2, %s276
        %v278 = vld [vmem:[%s225] sm:$0x3]
        %v279 = vld [vmem:[%s234] sm:$0x3]
        %v280 = vsub.f32 %v279, 0.5019608
        %v281 = vld [vmem:[%s277] sm:$0x3]
        %v282 = vsub.f32 %v281, 0.5019608
        %v283 = vmul.f32 %v282, 1.402
        %v284 = vadd.f32 %v278, %v283
        %v285 = vmul.f32 %v280, 0.344136
        %v286 = vsub.f32 %v278, %v285
        %v287 = vmul.f32 %v282, 0.714136
        %v288 = vsub.f32 %v286, %v287
        %v289 = vmul.f32 %v280, 1.772
        %v290 = vadd.f32 %v278, %v289
        %v291 = vlaneseq
        %vm292 = vcmp.ge.s32.totalorder %v291, 0
        %vm293 = vcmp.lt.s32.totalorder %v291, 256
        %vm294 = vmand %vm292, %vm293
        %295 = vst.msk [vmem:[%s269] sm:$0x3] %vm294, %v284
        %s296 = scalar_lea.vmem %s269, 2 [#allocation7]
        %297 = vst.msk [vmem:[%s296] sm:$0x3] %vm294, %v288
        %s298 = scalar_lea.vmem %s269, 4 [#allocation7]
        %299 = vst.msk [vmem:[%s298] sm:$0x3] %vm294, %v290
        %s300 = sand.u32 %s129, 1
        %s301 = scalar_lea.sflag [#allocation4], %s300
        %s302 = sand.u32 %s129, 1
        %s303 = smul.addr %s302, 6
        %s304 = scalar_lea.vmem [#allocation7], %s303
        // Predicated region
        $region41: #{tpu_custom_call.1} parent=31 // pred_check
          %p305 = pneg %p139
        $region42: #{tpu_custom_call.1} parent=31 // pred_check_branch
          %307 = sbr.rel (%p305) target = $region44
        $region43: #{tpu_custom_call.1} parent=31 // pred_region
          %s309 = ssub.s32 96, 96
          %310 = vsyncadd %s301, %s309
          %s311 = smul.addr %s28, 2
          %s312 = smul.addr %s27, 6
          %s313 = sadd.s32 %s311, %s312
          %s314 = smul.addr %s313, 16
          %s315 = scalar_lea.hbm %s3, %s314
          %s316 = sshll.u32 %s304, 4
          %s317 = int_to_ptr.vmem [resolvable:$true] %s316
          %322 = dma.vmem_to_hbm [thread:$0]  %s317, 96, %s315, %s301, 32, 32, 2
        $region44: #{tpu_custom_call.1} parent=31 // pred_fallthru
          _
      $region32: #{tpu_custom_call.1} parent=5 // pred_fallthru
        _
      %p323 = scmp.le.s32.totalorder 2, %s18
      // Predicated region
      $region45: #{tpu_custom_call.1} parent=5 // pred_check
        %p324 = pneg %p323
      $region46: #{tpu_custom_call.1} parent=5 // pred_check_branch
        %326 = sbr.rel (%p324) target = $region48
      $region47: #{tpu_custom_call.1} parent=5 // pred_region
        %s327 = ssub.s32 %s18, 2
        // Predicated region
        $region49: #{tpu_custom_call.1} parent=47 // pred_check
          %p328 = pneg %p145
        $region50: #{tpu_custom_call.1} parent=47 // pred_check_branch
          %330 = sbr.rel (%p328) target = $region52
        $region51: #{tpu_custom_call.1} parent=47 // pred_region
          %s331 = sand.u32 %s130, 1
          %s332 = scalar_lea.sflag [#allocation4], %s331
          %s333 = sand.u32 %s130, 1
          %s334 = smul.addr %s333, 6
          %s335 = scalar_lea.vmem [#allocation7], %s334
          %336 = dma.done %s332, 96
        $region52: #{tpu_custom_call.1} parent=47 // pred_fallthru
          _
      $region48: #{tpu_custom_call.1} parent=5 // pred_fallthru
        _
    $region6: #{tpu_custom_call.1} parent=1 // loop_footer
      %s22 = sadd.s32 1, %s18
    $region7: #{tpu_custom_call.1} parent=1 // loop_footer_branch
      %17 = sbr.rel target = $region3
    $region8: #{tpu_custom_call.1} parent=1 // loop_exit
      _
    %337 = vsyncpa [#allocation3], 1
    %s338 = scalar_lea.sflag [#allocation3], 1
    %339 = vsyncpa %s338, 1
    %340 = vsyncpa [#allocation6], 1
    %s341 = scalar_lea.sflag [#allocation6], 1
    %342 = vsyncpa %s341, 1
    %343 = vsyncpa [#allocation4], 1
    %s344 = scalar_lea.sflag [#allocation4], 1
    %345 = vsyncpa %s344, 1

</llo_original>
